<compile_context>
chip_gen: v6e
topology: v6e:2x2x1
jax: 0.10.0
libtpu: 0.0.40
codegen_flags: <defaults>
</compile_context>

<pallas_src>
import functools

import jax
import jax.numpy as jnp
from jax.experimental import pallas as pl
from jax.experimental.pallas import tpu as pltpu

GAMMA = 2           # implemented as explicit squares (VPU only, no pow/EUP)
EPS = 1e-3
LANES = 128
SUBLANES = 8
MAX_BLOCK_ROWS = 8192            # 8192*128*4B = 4 MiB/block for f32 inputs
VMEM_LIMIT_BYTES = 32 * 1024 * 1024   # explicit: v5e scoped default is 16 MiB


def _round_up(x, m):
    return (x + m - 1) // m * m


def _sublane_align(dtype):
    # Minimum sublane multiple for a (., 128) block of this dtype:
    # 8 for 4-byte, 16 for 2-byte, 32 for 1-byte elements.
    return max(SUBLANES, 32 // jnp.dtype(dtype).itemsize)


def _focal_loss_kernel(inp_ref, tgt_ref, out_ref, acc_ref, *,
                       total_n, block_rows, needs_mask, valid_in_last,
                       hard_targets):
    i = pl.program_id(0)
    is_last = i == pl.num_programs(0) - 1

    @pl.when(i == 0)
    def _():
        acc_ref[...] = jnp.zeros_like(acc_ref)

    # Kernel does the f32 upcast; the wrapper streams the original dtypes.
    p = inp_ref[...].astype(jnp.float32)
    t = tgt_ref[...].astype(jnp.float32)

    # input = input.clamp(eps, 1 - eps)
    p = jnp.clip(p, EPS, 1.0 - EPS)
    one_m_p = 1.0 - p

    if hard_targets:
        # Only exact for targets that are exactly {0, 1}: one log() per element
        # instead of two (the EUP has a single VLIW slot).
        q = jnp.where(t > 0.5, p, one_m_p)
        one_m_q = 1.0 - q
        unsigned = (one_m_q * one_m_q) * jnp.log(q)
    else:
        # General soft-target form — matches the PyTorch module exactly.
        unsigned = (t * (one_m_p * one_m_p) * jnp.log(p)
                    + (1.0 - t) * (p * p) * jnp.log(one_m_p))
    # NOTE: the leading negation is folded into the epilogue constant (-1/N).

    def accumulate(x):
        # Fold (block_rows, 128) -> one vreg (8, 128) with cross-vreg VPU adds;
        # keeps vst pressure minimal and leaves the XLU reduce for the epilogue.
        partial = x.reshape(block_rows // SUBLANES, SUBLANES, LANES).sum(axis=0)
        acc_ref[...] += partial

    if needs_mask:
        # Only the final block contains padded / out-of-bounds elements, so the
        # iota/compare/select is emitted on that grid step only.
        @pl.when(jnp.logical_not(is_last))
        def _():
            accumulate(unsigned)

        @pl.when(is_last)
        def _():
            row_ids = jax.lax.broadcasted_iota(jnp.int32, unsigned.shape, 0)
            col_ids = jax.lax.broadcasted_iota(jnp.int32, unsigned.shape, 1)
            in_block = row_ids * LANES + col_ids
            accumulate(jnp.where(in_block < valid_in_last, unsigned, 0.0))
    else:
        accumulate(unsigned)

    @pl.when(is_last)
    def _():
        # Single XLU reduction; mean and negation fused into one constant.
        neg_inv_n = jnp.float32(-1.0 / total_n)
        out_ref[...] = (jnp.sum(acc_ref[...], keepdims=True)
                        * neg_inv_n).astype(out_ref.dtype)


def focal_loss(inp, tgt, *, hard_targets=False, max_block_rows=MAX_BLOCK_ROWS):
    """Mean focal loss (gamma=2, eps=1e-3).

    hard_targets=True is a fast path that is only valid when every target is
    exactly 0 or 1; the default path matches the PyTorch module for arbitrary
    soft targets.
    """
    assert inp.shape == tgt.shape
    total_n = int(inp.size)
    assert total_n > 0

    row_align = max(_sublane_align(inp.dtype), _sublane_align(tgt.dtype))
    rows = pl.cdiv(total_n, LANES)
    padded_rows = _round_up(rows, row_align)

    block_rows = min(max_block_rows, padded_rows)
    block_rows = max(row_align, block_rows // row_align * row_align)
    n_blocks = pl.cdiv(padded_rows, block_rows)     # ragged final block is OK

    covered = n_blocks * block_rows * LANES
    needs_mask = covered != total_n
    valid_in_last = total_n - (n_blocks - 1) * block_rows * LANES

    def to_2d(x, pad_value):
        flat = x.reshape(-1)
        pad = padded_rows * LANES - total_n
        if pad:   # minimal pad (< row_align rows); aligned sizes need none
            flat = jnp.pad(flat, (0, pad),
                           constant_values=jnp.asarray(pad_value, x.dtype))
        return flat.reshape(padded_rows, LANES)

    inp2d = to_2d(inp, 0.5)   # benign pad values; masked exactly in-kernel
    tgt2d = to_2d(tgt, 0)

    kernel = functools.partial(
        _focal_loss_kernel,
        total_n=total_n,
        block_rows=block_rows,
        needs_mask=needs_mask,
        valid_in_last=valid_in_last,
        hard_targets=hard_targets,
    )

    bytes_in = int(inp2d.size) * inp2d.dtype.itemsize \
        + int(tgt2d.size) * tgt2d.dtype.itemsize + 4
    cost = pl.CostEstimate(
        flops=13 * total_n,
        transcendentals=(1 if hard_targets else 2) * total_n,
        bytes_accessed=bytes_in,
    )

    out = pl.pallas_call(
        kernel,
        out_shape=jax.ShapeDtypeStruct((1, 1), jnp.float32),
        grid_spec=pltpu.PrefetchScalarGridSpec(
            num_scalar_prefetch=0,
            grid=(n_blocks,),
            in_specs=[
                pl.BlockSpec((block_rows, LANES), lambda i: (i, 0)),
                pl.BlockSpec((block_rows, LANES), lambda i: (i, 0)),
            ],
            out_specs=pl.BlockSpec((1, 1), lambda i: (0, 0)),
            scratch_shapes=[pltpu.VMEM((SUBLANES, LANES), jnp.float32)],
        ),
        compiler_params=pltpu.CompilerParams(
            # The grid axis carries the accumulator -> must stay "arbitrary".
            dimension_semantics=("arbitrary",),
            vmem_limit_bytes=VMEM_LIMIT_BYTES,
        ),
        cost_estimate=cost,
    )(inp2d, tgt2d)
    return out[0, 0]


def focal_loss_ref(inp, tgt):
    p = jnp.clip(inp.astype(jnp.float32), EPS, 1.0 - EPS)
    t = tgt.astype(jnp.float32)
    loss = -(t * (1.0 - p) ** GAMMA * jnp.log(p)
             + (1.0 - t) * p ** GAMMA * jnp.log(1.0 - p))
    return jnp.mean(loss)


if __name__ == "__main__":
    key = jax.random.PRNGKey(0)
    k1, k2, k3, k4 = jax.random.split(key, 4)

    # Primary test: NCHW probabilities + binary targets, f32 (module usage).
    shape = (2, 4, 16, 16)
    x = jax.random.uniform(k1, shape, dtype=jnp.float32)
    y = (jax.random.uniform(k2, shape) > 0.5).astype(jnp.float32)

    out = jax.block_until_ready(focal_loss(x, y))
    ref = focal_loss_ref(x, y)
    assert jnp.allclose(out, ref, rtol=1e-5, atol=1e-6), (out, ref)

    # Hard-label fast path (only valid for exactly-{0,1} targets; y is binary).
    out_hard = jax.block_until_ready(focal_loss(x, y, hard_targets=True))
    assert jnp.allclose(out_hard, ref, rtol=1e-5, atol=1e-6), (out_hard, ref)

    # Ragged / masked tail + narrow dtypes (bf16 preds, int8 targets).
    shape2 = (3, 5, 7)
    xb = jax.random.uniform(k3, shape2, dtype=jnp.float32).astype(jnp.bfloat16)
    yb = (jax.random.uniform(k4, shape2) > 0.5).astype(jnp.int8)
    out2 = jax.block_until_ready(focal_loss(xb, yb))
    ref2 = focal_loss_ref(xb, yb)
    assert jnp.allclose(out2, ref2, rtol=1e-5, atol=1e-6), (out2, ref2)

    # Multi-block accumulation path (forced small block size).
    shape3 = (4, 4, 32, 32)
    x3 = jax.random.uniform(k1, shape3, dtype=jnp.float32)
    y3 = (jax.random.uniform(k2, shape3) > 0.5).astype(jnp.float32)
    out3 = jax.block_until_ready(focal_loss(x3, y3, max_block_rows=32))
    ref3 = focal_loss_ref(x3, y3)
    assert jnp.allclose(out3, ref3, rtol=1e-5, atol=1e-6), (out3, ref3)

    print("KERNEL_OK")
</pallas_src>

<mosaic_0001>
module attributes {stable_mosaic.version = 11 : i64} {
  func.func @_focal_loss_kernel(%arg0: i32, %arg1: memref<16x128xf32, #tpu.memory_space<vmem>>, %arg2: memref<16x128xf32, #tpu.memory_space<vmem>>, %arg3: memref<1x1xf32, #tpu.memory_space<vmem>>, %arg4: memref<8x128xf32, #tpu.memory_space<vmem>>) attributes {dimension_semantics = [#tpu.dimension_semantics<arbitrary>], iteration_bounds = array<i64: 1>, scalar_prefetch = 0 : i64, scratch_operands = 1 : i64, tpu.core_type = #tpu.core_type<tc>, window_params = [{transform_indices = @transform_0, window_bounds = array<i64: 16, 128>}, {transform_indices = @transform_1, window_bounds = array<i64: 16, 128>}, {pipeline_mode = #tpu.pipeline_mode<synchronous>, transform_indices = @transform_2, window_bounds = array<i64: 1, 1>}]} {
    %c0_i32 = arith.constant 0 : i32
    %0 = arith.cmpi eq, %arg0, %c0_i32 : i32
    %c0_i32_0 = arith.constant 0 : i32
    %1 = arith.cmpi eq, %arg0, %c0_i32_0 : i32
    %2 = arith.extui %1 : i1 to i32
    %c0_i32_1 = arith.constant 0 : i32
    %3 = arith.cmpi ne, %2, %c0_i32_1 : i32
    scf.if %3 {
      %cst_14 = arith.constant 0.000000e+00 : f32
      %30 = vector.broadcast %cst_14 : f32 to vector<8x128xf32>
      %c0_15 = arith.constant 0 : index
      %c0_16 = arith.constant 0 : index
      %31 = vector.load %arg4[%c0_15, %c0_16] : memref<8x128xf32, #tpu.memory_space<vmem>>, vector<8x128xf32>
      tpu.vector_store %arg4[%c0_15, %c0_16], %30 {strides = array<i32>} : memref<8x128xf32, #tpu.memory_space<vmem>>, vector<8x128xf32>,
    } else {
    }
    %c0 = arith.constant 0 : index
    %c0_2 = arith.constant 0 : index
    %4 = vector.load %arg1[%c0, %c0_2] : memref<16x128xf32, #tpu.memory_space<vmem>>, vector<16x128xf32>
    %c0_3 = arith.constant 0 : index
    %c0_4 = arith.constant 0 : index
    %5 = vector.load %arg2[%c0_3, %c0_4] : memref<16x128xf32, #tpu.memory_space<vmem>>, vector<16x128xf32>
    %cst = arith.constant 1.000000e-03 : f32
    %cst_5 = arith.constant 9.990000e-01 : f32
    %6 = vector.broadcast %cst : f32 to vector<16x128xf32>
    %7 = arith.maximumf %6, %4 : vector<16x128xf32>
    %8 = vector.broadcast %cst_5 : f32 to vector<16x128xf32>
    %9 = arith.minimumf %8, %7 : vector<16x128xf32>
    %cst_6 = arith.constant 1.000000e+00 : f32
    %10 = vector.broadcast %cst_6 : f32 to vector<16x128xf32>
    %11 = arith.subf %10, %9 : vector<16x128xf32>
    %12 = arith.mulf %11, %11 : vector<16x128xf32>
    %13 = arith.mulf %5, %12 : vector<16x128xf32>
    %14 = math.log %9 : vector<16x128xf32>
    %15 = arith.mulf %13, %14 : vector<16x128xf32>
    %cst_7 = arith.constant 1.000000e+00 : f32
    %16 = vector.broadcast %cst_7 : f32 to vector<16x128xf32>
    %17 = arith.subf %16, %5 : vector<16x128xf32>
    %18 = arith.mulf %9, %9 : vector<16x128xf32>
    %19 = arith.mulf %17, %18 : vector<16x128xf32>
    %20 = math.log %11 : vector<16x128xf32>
    %21 = arith.mulf %19, %20 : vector<16x128xf32>
    %22 = arith.addf %15, %21 : vector<16x128xf32>
    %23 = vector.shape_cast %22 : vector<16x128xf32> to vector<2x8x128xf32>
    %cst_8 = arith.constant dense<0.000000e+00> : vector<8x128xf32>
    %24 = vector.multi_reduction <add>, %23, %cst_8 [0] : vector<2x8x128xf32> to vector<8x128xf32>
    %c0_9 = arith.constant 0 : index
    %c0_10 = arith.constant 0 : index
    %25 = vector.load %arg4[%c0_9, %c0_10] : memref<8x128xf32, #tpu.memory_space<vmem>>, vector<8x128xf32>
    %26 = arith.addf %25, %24 : vector<8x128xf32>
    %c0_11 = arith.constant 0 : index
    %c0_12 = arith.constant 0 : index
    %27 = vector.load %arg4[%c0_11, %c0_12] : memref<8x128xf32, #tpu.memory_space<vmem>>, vector<8x128xf32>
    tpu.vector_store %arg4[%c0_11, %c0_12], %26 {strides = array<i32>} : memref<8x128xf32, #tpu.memory_space<vmem>>, vector<8x128xf32>,
    %28 = arith.extui %0 : i1 to i32
    %c0_i32_13 = arith.constant 0 : i32
    %29 = arith.cmpi ne, %28, %c0_i32_13 : i32
    scf.if %29 {
      %c0_14 = arith.constant 0 : index
      %c0_15 = arith.constant 0 : index
      %30 = vector.load %arg4[%c0_14, %c0_15] : memref<8x128xf32, #tpu.memory_space<vmem>>, vector<8x128xf32>
      %31 = vector.shape_cast %30 : vector<8x128xf32> to vector<1x8x128xf32>
      %cst_16 = arith.constant dense<0.000000e+00> : vector<1xf32>
      %32 = vector.multi_reduction <add>, %31, %cst_16 [1, 2] : vector<1x8x128xf32> to vector<1xf32>
      %33 = vector.shape_cast %32 : vector<1xf32> to vector<1x1x1xf32>
      %34 = vector.extract %33[0, 0, 0] : f32 from vector<1x1x1xf32>
      %35 = vector.broadcast %34 : f32 to vector<1x1xf32>
      %cst_17 = arith.constant -4.8828125E-4 : f32
      %36 = vector.broadcast %cst_17 : f32 to vector<1x1xf32>
      %37 = arith.mulf %35, %36 : vector<1x1xf32>
      %c0_18 = arith.constant 0 : index
      %c0_19 = arith.constant 0 : index
      %38 = vector.load %arg3[%c0_18, %c0_19] : memref<1x1xf32, #tpu.memory_space<vmem>>, vector<1x1xf32>
      tpu.vector_store %arg3[%c0_18, %c0_19], %37 {strides = array<i32>} : memref<1x1xf32, #tpu.memory_space<vmem>>, vector<1x1xf32>,
    } else {
    }
    return
  }
  func.func @transform_0(%arg0: i32) -> (i32, i32) {
    %c0_i32 = arith.constant 0 : i32
    %c0_i32_0 = arith.constant 0 : i32
    return %arg0, %c0_i32 : i32, i32
  }
  func.func @transform_1(%arg0: i32) -> (i32, i32) {
    %c0_i32 = arith.constant 0 : i32
    %c0_i32_0 = arith.constant 0 : i32
    return %arg0, %c0_i32 : i32, i32
  }
  func.func @transform_2(%arg0: i32) -> (i32, i32) {
    %c0_i32 = arith.constant 0 : i32
    %c0_i32_0 = arith.constant 0 : i32
    %c0_i32_1 = arith.constant 0 : i32
    return %c0_i32, %c0_i32_0 : i32, i32
  }
}

</mosaic_0001>

<llo_original>
// kernel: tpu_custom_call.1
$region0: #{tpu_custom_call.1}
  #allocation0 [shape = 'u32[]', space=smem, size = 0x4, offset = 0x4, fixed_abs, tag = 'smem constant byte address 0x4 - core index']
  #allocation1 [shape = 'u32[144,128]{1,0:T(1,128)}', space=vmem, size = 0x12000, scoped, tag = 'internal scratch']
  #allocation2 [shape = 'f32[8,128]{1,0:T(8,128)}', space=vmem, size = 0x1000, scoped, tag = 'scratch operand']
  %s0 = inlined_call_operand.hbm [shape: f32[16,128], index: 0, kind: input, shape index: {}]
  %s1 = inlined_call_operand.hbm [shape: f32[16,128], index: 1, kind: input, shape index: {}]
  %s2 = inlined_call_operand.hbm [shape: f32[1,1], index: 2, kind: output, shape index: {}]
  %s3 = sld [smem:[#allocation0]]
  $region34: #{tpu_custom_call.1} parent=0
    _
  %s5 = ssub.s32 1, %s3
  %s6 = scalar_select 0, %s5, %s3
  $region1: #{tpu_custom_call.1} parent=0
    #allocation3 [shape = 'u8[8192]{0}', space=vmem, size = 0x2000, scoped, tag = 'input window, operand 0, single buffered']
    #allocation4 [shape = 's32[1]{0}', space=sflag, size = 0x4, scoped, tag = 'scoped memory for tpu_custom_call.1']
    #allocation5 [shape = 's32[1]{0}', space=sflag, size = 0x4, scoped, tag = 'scoped memory for tpu_custom_call.1']
    #allocation6 [shape = 'u8[8192]{0}', space=vmem, size = 0x2000, scoped, tag = 'input window, operand 1, single buffered']
    #allocation7 [shape = 's32[1]{0}', space=sflag, size = 0x4, scoped, tag = 'scoped memory for tpu_custom_call.1']
    #allocation8 [shape = 'u8[512]{0}', space=vmem, size = 0x400, scoped, tag = 'output window, operand 0, single buffered']
    %7 = vsyncpa [#allocation4], 0
    %8 = vsyncpa [#allocation7], 0
    %9 = vsyncpa [#allocation5], 0
    // Predicated region
    $region2: #{tpu_custom_call.1} parent=1 // pred_check
      _
    $region3: #{tpu_custom_call.1} parent=1 // pred_check_branch
      %11 = sbr.rel (0) target = $region5
    $region4: #{tpu_custom_call.1} parent=1 // pred_region
      %s13 = ssub.s32 256, 256
      %14 = vsyncadd [#allocation4], %s13
      %s15 = sshll.u32 [#allocation3], 4
      %s16 = int_to_ptr.vmem [resolvable:$true] %s15
      %21 = dma.hbm_to_vmem [thread:$0]  %s0, 256, %s16, [#allocation4], 128, 128, 8
    $region5: #{tpu_custom_call.1} parent=1 // pred_fallthru
      _
    // Predicated region
    $region6: #{tpu_custom_call.1} parent=1 // pred_check
      _
    $region7: #{tpu_custom_call.1} parent=1 // pred_check_branch
      %23 = sbr.rel (0) target = $region9
    $region8: #{tpu_custom_call.1} parent=1 // pred_region
      %s25 = ssub.s32 256, 256
      %26 = vsyncadd [#allocation7], %s25
      %s27 = sshll.u32 [#allocation6], 4
      %s28 = int_to_ptr.vmem [resolvable:$true] %s27
      %33 = dma.hbm_to_vmem [thread:$0]  %s1, 256, %s28, [#allocation7], 128, 128, 8
    $region9: #{tpu_custom_call.1} parent=1 // pred_fallthru
      _
    // Predicated region
    $region10: #{tpu_custom_call.1} parent=1 // pred_check
      _
    $region11: #{tpu_custom_call.1} parent=1 // pred_check_branch
      %35 = sbr.rel (0) target = $region13
    $region12: #{tpu_custom_call.1} parent=1 // pred_region
      %36 = dma.done [#allocation4], 256
    $region13: #{tpu_custom_call.1} parent=1 // pred_fallthru
      _
    // Predicated region
    $region14: #{tpu_custom_call.1} parent=1 // pred_check
      _
    $region15: #{tpu_custom_call.1} parent=1 // pred_check_branch
      %38 = sbr.rel (0) target = $region17
    $region16: #{tpu_custom_call.1} parent=1 // pred_region
      %39 = dma.done [#allocation7], 256
    $region17: #{tpu_custom_call.1} parent=1 // pred_fallthru
      _
    %p40 = scmp.eq.s32.totalorder 0, 0
    // Predicated region
    $region18: #{tpu_custom_call.1} parent=1 // pred_check
      %p41 = pneg %p40
    $region19: #{tpu_custom_call.1} parent=1 // pred_check_branch
      %43 = sbr.rel (%p41) target = $region21
    $region20: #{tpu_custom_call.1} parent=1 // pred_region
      %44 = vst [vmem:[#allocation2] sm:$0xff] 0.0
    $region21: #{tpu_custom_call.1} parent=1 // pred_fallthru
      _
    %v45 = vld [vmem:[#allocation3] sm:$0xff]
    %v46 = vld [vmem:[#allocation3 + $0x8] sm:$0xff]
    %v47 = vld [vmem:[#allocation6] sm:$0xff]
    %v48 = vld [vmem:[#allocation6 + $0x8] sm:$0xff]
    %v49 = vmax.f32 %v45, 0.001
    %v50 = vmax.f32 %v46, 0.001
    %v51 = vmin.f32 %v49, 0.999
    %v52 = vmin.f32 %v50, 0.999
    %v53 = vsub.f32 1.0, %v51
    %v54 = vsub.f32 1.0, %v52
    %v55 = vmul.f32 %v53, %v53
    %v56 = vmul.f32 %v54, %v54
    %v57 = vmul.f32 %v47, %v55
    %v58 = vmul.f32 %v48, %v56
    %v59 = vlog2.pop %v51
    %v60 = vmul.f32 %v59, 0.6931472
    %v61 = vlog2.pop %v52
    %v62 = vmul.f32 %v61, 0.6931472
    %v63 = vmul.f32 %v57, %v60
    %v64 = vmul.f32 %v58, %v62
    %v65 = vsub.f32 1.0, %v47
    %v66 = vsub.f32 1.0, %v48
    %v67 = vmul.f32 %v51, %v51
    %v68 = vmul.f32 %v52, %v52
    %v69 = vmul.f32 %v65, %v67
    %v70 = vmul.f32 %v66, %v68
    %v71 = vlog2.pop %v53
    %v72 = vmul.f32 %v71, 0.6931472
    %v73 = vlog2.pop %v54
    %v74 = vmul.f32 %v73, 0.6931472
    %v75 = vmul.f32 %v69, %v72
    %v76 = vmul.f32 %v70, %v74
    %v77 = vadd.f32 %v63, %v75
    %v78 = vadd.f32 %v64, %v76
    %v79 = vadd.f32 %v77, %v78
    %v80 = vld [vmem:[#allocation2] sm:$0xff]
    %v81 = vadd.f32 %v80, %v79
    %82 = vst [vmem:[#allocation2] sm:$0xff] %v81
    // Predicated region
    $region22: #{tpu_custom_call.1} parent=1 // pred_check
      %p83 = pneg %p40
    $region23: #{tpu_custom_call.1} parent=1 // pred_check_branch
      %85 = sbr.rel (%p83) target = $region25
    $region24: #{tpu_custom_call.1} parent=1 // pred_region
      %v86 = vld [vmem:[#allocation2] sm:$0xff]
      %87 = vadd.xlane.f32.xlu0 %v86
      %v88 = vpop.xlane.xlu0 %87
      %v89 = vrot.slane %v88, 4
      %v90 = vadd.f32 %v88, %v89
      %v91 = vrot.slane %v90, 2
      %v92 = vadd.f32 %v90, %v91
      %v93 = vrot.slane %v92, 1
      %v94 = vadd.f32 %v92, %v93
      %s95 = vtos %v94
      %v96 = vstv %s95
      %v97 = vmul.f32 %v96, -0.00048828125
      %vm98 = vcmask 0
      %99 = vst.msk [vmem:[#allocation8] sm:$0x1] %vm98, %v97
    $region25: #{tpu_custom_call.1} parent=1 // pred_fallthru
      _
    // Predicated region
    $region26: #{tpu_custom_call.1} parent=1 // pred_check
      _
    $region27: #{tpu_custom_call.1} parent=1 // pred_check_branch
      %101 = sbr.rel (0) target = $region29
    $region28: #{tpu_custom_call.1} parent=1 // pred_region
      %s103 = ssub.s32 16, 16
      %104 = vsyncadd [#allocation5], %s103
      %s106 = sshll.u32 [#allocation8], 4
      %s107 = int_to_ptr.vmem [resolvable:$true] %s106
      %109 = dma.vmem_to_hbm [thread:$0]  %s107, 16, %s2, [#allocation5]
    $region29: #{tpu_custom_call.1} parent=1 // pred_fallthru
      _
    // Predicated region
    $region30: #{tpu_custom_call.1} parent=1 // pred_check
      _
    $region31: #{tpu_custom_call.1} parent=1 // pred_check_branch
      %111 = sbr.rel (0) target = $region33
    $region32: #{tpu_custom_call.1} parent=1 // pred_region
      %112 = dma.done [#allocation5], 16
    $region33: #{tpu_custom_call.1} parent=1 // pred_fallthru
      _
    %113 = vsyncpa [#allocation4], 1
    %114 = vsyncpa [#allocation7], 1
    %115 = vsyncpa [#allocation5], 1

</llo_original>
